<compile_context>
chip_gen: v5e
topology: v5e:2x2
jax: 0.10.0
libtpu: 0.0.40
codegen_flags: <defaults>
</compile_context>

<pallas_src>
import jax
import jax.numpy as jnp
from jax.experimental import pallas as pl
from jax.experimental.pallas import tpu as pltpu

EPS = 1e-5


def melresnet_kernel(x_ref, w_in_ref, g0_ref, be0_ref,
                     w1_ref, g1_ref, be1_ref,
                     w2_ref, g2_ref, be2_ref,
                     w_out_ref, b_out_ref, o_ref):
    R = w1_ref.shape[0]

    def bn_relu(h, gamma, beta, relu=True):
        # training-mode batch norm, stats over rows (= batch * time), f32 math.
        mean = jnp.mean(h, axis=0, keepdims=True)
        mean_sq = jnp.mean(h * h, axis=0, keepdims=True)
        var = mean_sq - mean * mean
        y = (h - mean) * (gamma * jax.lax.rsqrt(var + EPS)) + beta
        return jnp.maximum(y, 0.0) if relu else y

    # conv_in: single im2col matmul, M = B*T_out, K = k*Cin (padded), N = C.
    h = jnp.dot(x_ref[...], w_in_ref[...],
                preferred_element_type=jnp.float32)          # (M, C) f32
    h = bn_relu(h, g0_ref[...], be0_ref[...])

    def res_block(r, h):
        t = jnp.dot(h.astype(jnp.bfloat16), w1_ref[r],
                    preferred_element_type=jnp.float32)
        t = bn_relu(t, g1_ref[r], be1_ref[r])
        t = jnp.dot(t.astype(jnp.bfloat16), w2_ref[r],
                    preferred_element_type=jnp.float32)
        t = bn_relu(t, g2_ref[r], be2_ref[r], relu=False)
        return h + t

    h = jax.lax.fori_loop(0, R, res_block, h)

    out = jnp.dot(h.astype(jnp.bfloat16), w_out_ref[...],
                  preferred_element_type=jnp.float32)
    o_ref[...] = (out + b_out_ref[...]).astype(o_ref.dtype)


def _pad_to(n, m=128):
    return ((n + m - 1) // m) * m


def mel_resnet_forward(x_nct, p):
    B, Cin, T = x_nct.shape
    C, _, k = p["w_in"].shape
    R = p["w1"].shape[0]
    Ro = p["w_out"].shape[0]
    T_out = T - (k - 1)
    M = B * T_out

    K = k * Cin
    Kp = _pad_to(K)
    Cp = _pad_to(C)
    Rop = _pad_to(Ro)

    # --- im2col of the input for conv_in: (B, Cin, T) -> (M, Kp), bf16 ---
    x_btc = jnp.transpose(x_nct, (0, 2, 1)).astype(jnp.float32)   # (B, T, Cin)
    cols = [x_btc[:, j:j + T_out, :] for j in range(k)]
    x2 = jnp.concatenate(cols, axis=-1).reshape(M, K)
    x2 = jnp.pad(x2, ((0, 0), (0, Kp - K))).astype(jnp.bfloat16)

    # --- weights re-laid-out for (rows, channels) matmuls, zero-padded ---
    # conv_in: (C, Cin, k) -> (k*Cin, C)
    w_in = jnp.transpose(p["w_in"], (2, 1, 0)).reshape(K, C)
    w_in = jnp.pad(w_in, ((0, Kp - K), (0, Cp - C))).astype(jnp.bfloat16)
    # res-block 1x1 convs: (R, Cout, Cin, 1) -> (R, Cin, Cout)
    w1 = jnp.transpose(p["w1"][..., 0], (0, 2, 1))
    w1 = jnp.pad(w1, ((0, 0), (0, Cp - C), (0, Cp - C))).astype(jnp.bfloat16)
    w2 = jnp.transpose(p["w2"][..., 0], (0, 2, 1))
    w2 = jnp.pad(w2, ((0, 0), (0, Cp - C), (0, Cp - C))).astype(jnp.bfloat16)
    # conv_out: (Ro, C, 1) -> (C, Ro)
    w_out = jnp.transpose(p["w_out"][..., 0], (1, 0))
    w_out = jnp.pad(w_out, ((0, Cp - C), (0, Rop - Ro))).astype(jnp.bfloat16)
    b_out = jnp.pad(p["b_out"], (0, Rop - Ro))[None, :].astype(jnp.float32)

    # BN affine params (f32); padded channels get gamma=beta=0 -> stay zero.
    def pad1(v):   # (C,) -> (1, Cp)
        return jnp.pad(v, (0, Cp - C))[None, :].astype(jnp.float32)

    def padR(v):   # (R, C) -> (R, 1, Cp)
        return jnp.pad(v, ((0, 0), (0, Cp - C)))[:, None, :].astype(jnp.float32)

    g0, be0 = pad1(p["g0"]), pad1(p["be0"])
    g1, be1 = padR(p["g1"]), padR(p["be1"])
    g2, be2 = padR(p["g2"]), padR(p["be2"])

    inputs = (x2, w_in, g0, be0, w1, g1, be1, w2, g2, be2, w_out, b_out)

    def full_spec(shape):
        n = len(shape)
        return pl.BlockSpec(shape, lambda i, n=n: (0,) * n)

    # Explicit scoped-VMEM budget: inputs (double-buffered) + output + ~8
    # f32 activation copies of (M, Cp), with headroom; clamped to 64 MiB.
    est_bytes = (2 * sum(int(a.size) * a.dtype.itemsize for a in inputs)
                 + 2 * M * Rop * 4
                 + 8 * M * Cp * 4)
    vmem_limit = int(min(max(est_bytes + (8 << 20), 32 << 20), 64 << 20))

    out = pl.pallas_call(
        melresnet_kernel,
        out_shape=jax.ShapeDtypeStruct((M, Rop), jnp.float32),
        grid=(1,),
        in_specs=[full_spec(a.shape) for a in inputs],
        out_specs=full_spec((M, Rop)),
        compiler_params=pltpu.CompilerParams(
            dimension_semantics=("arbitrary",),
            vmem_limit_bytes=vmem_limit),
    )(*inputs)

    # strip channel padding, back to PyTorch NCT: (B, res_out_dims, T_out)
    out = out[:, :Ro].reshape(B, T_out, Ro)
    return jnp.transpose(out, (0, 2, 1))


def init_params(key, res_blocks, in_dims, compute_dims, res_out_dims, pad):
    k = pad * 2 + 1
    keys = jax.random.split(key, 11)

    def nrm(kk, shape, scale=0.1):
        return scale * jax.random.normal(kk, shape, jnp.float32)

    p = {}
    p["w_in"] = nrm(keys[0], (compute_dims, in_dims, k))                 # conv_in (no bias)
    p["g0"] = 1.0 + nrm(keys[1], (compute_dims,))                        # batch_norm affine
    p["be0"] = nrm(keys[2], (compute_dims,))
    p["w1"] = nrm(keys[3], (res_blocks, compute_dims, compute_dims, 1))  # ResBlock conv1
    p["g1"] = 1.0 + nrm(keys[4], (res_blocks, compute_dims))
    p["be1"] = nrm(keys[5], (res_blocks, compute_dims))
    p["w2"] = nrm(keys[6], (res_blocks, compute_dims, compute_dims, 1))  # ResBlock conv2
    p["g2"] = 1.0 + nrm(keys[7], (res_blocks, compute_dims))
    p["be2"] = nrm(keys[8], (res_blocks, compute_dims))
    p["w_out"] = nrm(keys[9], (res_out_dims, compute_dims, 1))           # conv_out
    p["b_out"] = nrm(keys[10], (res_out_dims,))
    return p


def reference_forward(x, p):
    """Pure-JAX f32 reference reproducing the PyTorch module (NCT layout)."""
    def conv1d(x, w):
        return jax.lax.conv_general_dilated(
            x, w, (1,), "VALID", dimension_numbers=("NCH", "OIH", "NCH"))

    def bn(x, g, b):
        m = jnp.mean(x, axis=(0, 2), keepdims=True)
        v = jnp.mean((x - m) ** 2, axis=(0, 2), keepdims=True)
        return (x - m) * (g[None, :, None] / jnp.sqrt(v + EPS)) + b[None, :, None]

    h = conv1d(x, p["w_in"])
    h = jnp.maximum(bn(h, p["g0"], p["be0"]), 0.0)
    for r in range(p["w1"].shape[0]):
        res = h
        t = conv1d(h, p["w1"][r])
        t = jnp.maximum(bn(t, p["g1"][r], p["be1"][r]), 0.0)
        t = conv1d(t, p["w2"][r])
        t = bn(t, p["g2"][r], p["be2"][r])
        h = t + res
    return conv1d(h, p["w_out"]) + p["b_out"][None, :, None]


if __name__ == "__main__":
    res_blocks, in_dims, compute_dims, res_out_dims, pad = 2, 8, 32, 16, 2
    B, T = 2, 16

    key = jax.random.PRNGKey(0)
    kx, kp = jax.random.split(key)
    x = jax.random.normal(kx, (B, in_dims, T), jnp.float32)
    params = init_params(kp, res_blocks, in_dims, compute_dims, res_out_dims, pad)

    out = jax.block_until_ready(mel_resnet_forward(x, params))
    ref = reference_forward(x, params)

    assert out.shape == (B, res_out_dims, T - 2 * pad), out.shape
    # matmul operands are bf16 (f32 accumulation), so compare at bf16-level tolerance
    max_err = float(jnp.max(jnp.abs(out - ref)))
    assert max_err < 5e-2, max_err
    print("KERNEL_OK")
</pallas_src>

<mosaic_0001>
module attributes {stable_mosaic.version = 11 : i64} {
  func.func @melresnet_kernel(%arg0: i32, %arg1: memref<24x128xbf16, #tpu.memory_space<vmem>>, %arg2: memref<128x128xbf16, #tpu.memory_space<vmem>>, %arg3: memref<1x128xf32, #tpu.memory_space<vmem>>, %arg4: memref<1x128xf32, #tpu.memory_space<vmem>>, %arg5: memref<2x128x128xbf16, #tpu.memory_space<vmem>>, %arg6: memref<2x1x128xf32, #tpu.memory_space<vmem>>, %arg7: memref<2x1x128xf32, #tpu.memory_space<vmem>>, %arg8: memref<2x128x128xbf16, #tpu.memory_space<vmem>>, %arg9: memref<2x1x128xf32, #tpu.memory_space<vmem>>, %arg10: memref<2x1x128xf32, #tpu.memory_space<vmem>>, %arg11: memref<128x128xbf16, #tpu.memory_space<vmem>>, %arg12: memref<1x128xf32, #tpu.memory_space<vmem>>, %arg13: memref<24x128xf32, #tpu.memory_space<vmem>>) attributes {dimension_semantics = [#tpu.dimension_semantics<arbitrary>], iteration_bounds = array<i64: 1>, scalar_prefetch = 0 : i64, scratch_operands = 0 : i64, tpu.core_type = #tpu.core_type<tc>, window_params = [{pipeline_mode = #tpu.pipeline_mode<synchronous>, transform_indices = @transform_0, window_bounds = array<i64: 24, 128>}, {pipeline_mode = #tpu.pipeline_mode<synchronous>, transform_indices = @transform_1, window_bounds = array<i64: 128, 128>}, {pipeline_mode = #tpu.pipeline_mode<synchronous>, transform_indices = @transform_2, window_bounds = array<i64: 1, 128>}, {pipeline_mode = #tpu.pipeline_mode<synchronous>, transform_indices = @transform_3, window_bounds = array<i64: 1, 128>}, {pipeline_mode = #tpu.pipeline_mode<synchronous>, transform_indices = @transform_4, window_bounds = array<i64: 2, 128, 128>}, {pipeline_mode = #tpu.pipeline_mode<synchronous>, transform_indices = @transform_5, window_bounds = array<i64: 2, 1, 128>}, {pipeline_mode = #tpu.pipeline_mode<synchronous>, transform_indices = @transform_6, window_bounds = array<i64: 2, 1, 128>}, {pipeline_mode = #tpu.pipeline_mode<synchronous>, transform_indices = @transform_7, window_bounds = array<i64: 2, 128, 128>}, {pipeline_mode = #tpu.pipeline_mode<synchronous>, transform_indices = @transform_8, window_bounds = array<i64: 2, 1, 128>}, {pipeline_mode = #tpu.pipeline_mode<synchronous>, transform_indices = @transform_9, window_bounds = array<i64: 2, 1, 128>}, {pipeline_mode = #tpu.pipeline_mode<synchronous>, transform_indices = @transform_10, window_bounds = array<i64: 128, 128>}, {pipeline_mode = #tpu.pipeline_mode<synchronous>, transform_indices = @transform_11, window_bounds = array<i64: 1, 128>}, {pipeline_mode = #tpu.pipeline_mode<synchronous>, transform_indices = @transform_12, window_bounds = array<i64: 24, 128>}]} {
    %c0 = arith.constant 0 : index
    %c0_0 = arith.constant 0 : index
    %0 = vector.load %arg1[%c0, %c0_0] : memref<24x128xbf16, #tpu.memory_space<vmem>>, vector<24x128xbf16>
    %c0_1 = arith.constant 0 : index
    %c0_2 = arith.constant 0 : index
    %1 = vector.load %arg2[%c0_1, %c0_2] : memref<128x128xbf16, #tpu.memory_space<vmem>>, vector<128x128xbf16>
    %cst = arith.constant dense<0.000000e+00> : vector<24x128xf32>
    %2 = tpu.matmul %0, %1, %cst {dimension_numbers = #tpu.dot_dimension_numbers<[1], [0], [0], [1], [0, 0, 1, 1], [], []>} : vector<24x128xbf16>, vector<128x128xbf16>, vector<24x128xf32> -> vector<24x128xf32>
    %c0_3 = arith.constant 0 : index
    %c0_4 = arith.constant 0 : index
    %3 = vector.load %arg3[%c0_3, %c0_4] : memref<1x128xf32, #tpu.memory_space<vmem>>, vector<1x128xf32>
    %c0_5 = arith.constant 0 : index
    %c0_6 = arith.constant 0 : index
    %4 = vector.load %arg4[%c0_5, %c0_6] : memref<1x128xf32, #tpu.memory_space<vmem>>, vector<1x128xf32>
    %cst_7 = arith.constant dense<0.000000e+00> : vector<128xf32>
    %5 = vector.multi_reduction <add>, %2, %cst_7 [0] : vector<24x128xf32> to vector<128xf32>
    %6 = vector.shape_cast %5 : vector<128xf32> to vector<1x128xf32>
    %cst_8 = arith.constant 2.400000e+01 : f32
    %7 = vector.broadcast %cst_8 : f32 to vector<1x128xf32>
    %8 = arith.divf %6, %7 : vector<1x128xf32>
    %9 = arith.mulf %2, %2 : vector<24x128xf32>
    %cst_9 = arith.constant dense<0.000000e+00> : vector<128xf32>
    %10 = vector.multi_reduction <add>, %9, %cst_9 [0] : vector<24x128xf32> to vector<128xf32>
    %11 = vector.shape_cast %10 : vector<128xf32> to vector<1x128xf32>
    %cst_10 = arith.constant 2.400000e+01 : f32
    %12 = vector.broadcast %cst_10 : f32 to vector<1x128xf32>
    %13 = arith.divf %11, %12 : vector<1x128xf32>
    %14 = arith.mulf %8, %8 : vector<1x128xf32>
    %15 = arith.subf %13, %14 : vector<1x128xf32>
    %16 = vector.broadcast %8 : vector<1x128xf32> to vector<24x128xf32>
    %17 = arith.subf %2, %16 : vector<24x128xf32>
    %cst_11 = arith.constant 9.99999974E-6 : f32
    %18 = vector.broadcast %cst_11 : f32 to vector<1x128xf32>
    %19 = arith.addf %15, %18 : vector<1x128xf32>
    %20 = math.rsqrt %19 : vector<1x128xf32>
    %21 = arith.mulf %3, %20 : vector<1x128xf32>
    %22 = vector.broadcast %21 : vector<1x128xf32> to vector<24x128xf32>
    %23 = arith.mulf %17, %22 : vector<24x128xf32>
    %24 = vector.broadcast %4 : vector<1x128xf32> to vector<24x128xf32>
    %25 = arith.addf %23, %24 : vector<24x128xf32>
    %cst_12 = arith.constant 0.000000e+00 : f32
    %26 = vector.broadcast %cst_12 : f32 to vector<24x128xf32>
    %27 = arith.maximumf %25, %26 : vector<24x128xf32>
    %c0_i32 = arith.constant 0 : i32
    %c2_i32 = arith.constant 2 : i32
    %28 = arith.addi %c0_i32, %c2_i32 : i32
    %c1_i32 = arith.constant 1 : i32
    %29 = scf.for %arg14 = %c0_i32 to %28 step %c1_i32 iter_args(%arg15 = %27) -> (vector<24x128xf32>)  : i32 {
      %37 = arith.truncf %arg15 : vector<24x128xf32> to vector<24x128xbf16>
      %38 = arith.index_cast %arg14 : i32 to index
      %c0_21 = arith.constant 0 : index
      %c0_22 = arith.constant 0 : index
      %39 = vector.load %arg5[%38, %c0_21, %c0_22] : memref<2x128x128xbf16, #tpu.memory_space<vmem>>, vector<1x128x128xbf16>
      %40 = vector.shape_cast %39 : vector<1x128x128xbf16> to vector<128x128xbf16>
      %cst_23 = arith.constant dense<0.000000e+00> : vector<24x128xf32>
      %41 = tpu.matmul %37, %40, %cst_23 {dimension_numbers = #tpu.dot_dimension_numbers<[1], [0], [0], [1], [0, 0, 1, 1], [], []>} : vector<24x128xbf16>, vector<128x128xbf16>, vector<24x128xf32> -> vector<24x128xf32>
      %42 = arith.index_cast %arg14 : i32 to index
      %c0_24 = arith.constant 0 : index
      %c0_25 = arith.constant 0 : index
      %43 = vector.load %arg6[%42, %c0_24, %c0_25] : memref<2x1x128xf32, #tpu.memory_space<vmem>>, vector<1x1x128xf32>
      %44 = vector.shape_cast %43 : vector<1x1x128xf32> to vector<1x128xf32>
      %45 = arith.index_cast %arg14 : i32 to index
      %c0_26 = arith.constant 0 : index
      %c0_27 = arith.constant 0 : index
      %46 = vector.load %arg7[%45, %c0_26, %c0_27] : memref<2x1x128xf32, #tpu.memory_space<vmem>>, vector<1x1x128xf32>
      %47 = vector.shape_cast %46 : vector<1x1x128xf32> to vector<1x128xf32>
      %cst_28 = arith.constant dense<0.000000e+00> : vector<128xf32>
      %48 = vector.multi_reduction <add>, %41, %cst_28 [0] : vector<24x128xf32> to vector<128xf32>
      %49 = vector.shape_cast %48 : vector<128xf32> to vector<1x128xf32>
      %cst_29 = arith.constant 2.400000e+01 : f32
      %50 = vector.broadcast %cst_29 : f32 to vector<1x128xf32>
      %51 = arith.divf %49, %50 : vector<1x128xf32>
      %52 = arith.mulf %41, %41 : vector<24x128xf32>
      %cst_30 = arith.constant dense<0.000000e+00> : vector<128xf32>
      %53 = vector.multi_reduction <add>, %52, %cst_30 [0] : vector<24x128xf32> to vector<128xf32>
      %54 = vector.shape_cast %53 : vector<128xf32> to vector<1x128xf32>
      %cst_31 = arith.constant 2.400000e+01 : f32
      %55 = vector.broadcast %cst_31 : f32 to vector<1x128xf32>
      %56 = arith.divf %54, %55 : vector<1x128xf32>
      %57 = arith.mulf %51, %51 : vector<1x128xf32>
      %58 = arith.subf %56, %57 : vector<1x128xf32>
      %59 = vector.broadcast %51 : vector<1x128xf32> to vector<24x128xf32>
      %60 = arith.subf %41, %59 : vector<24x128xf32>
      %cst_32 = arith.constant 9.99999974E-6 : f32
      %61 = vector.broadcast %cst_32 : f32 to vector<1x128xf32>
      %62 = arith.addf %58, %61 : vector<1x128xf32>
      %63 = math.rsqrt %62 : vector<1x128xf32>
      %64 = arith.mulf %44, %63 : vector<1x128xf32>
      %65 = vector.broadcast %64 : vector<1x128xf32> to vector<24x128xf32>
      %66 = arith.mulf %60, %65 : vector<24x128xf32>
      %67 = vector.broadcast %47 : vector<1x128xf32> to vector<24x128xf32>
      %68 = arith.addf %66, %67 : vector<24x128xf32>
      %cst_33 = arith.constant 0.000000e+00 : f32
      %69 = vector.broadcast %cst_33 : f32 to vector<24x128xf32>
      %70 = arith.maximumf %68, %69 : vector<24x128xf32>
      %71 = arith.truncf %70 : vector<24x128xf32> to vector<24x128xbf16>
      %72 = arith.index_cast %arg14 : i32 to index
      %c0_34 = arith.constant 0 : index
      %c0_35 = arith.constant 0 : index
      %73 = vector.load %arg8[%72, %c0_34, %c0_35] : memref<2x128x128xbf16, #tpu.memory_space<vmem>>, vector<1x128x128xbf16>
      %74 = vector.shape_cast %73 : vector<1x128x128xbf16> to vector<128x128xbf16>
      %cst_36 = arith.constant dense<0.000000e+00> : vector<24x128xf32>
      %75 = tpu.matmul %71, %74, %cst_36 {dimension_numbers = #tpu.dot_dimension_numbers<[1], [0], [0], [1], [0, 0, 1, 1], [], []>} : vector<24x128xbf16>, vector<128x128xbf16>, vector<24x128xf32> -> vector<24x128xf32>
      %76 = arith.index_cast %arg14 : i32 to index
      %c0_37 = arith.constant 0 : index
      %c0_38 = arith.constant 0 : index
      %77 = vector.load %arg9[%76, %c0_37, %c0_38] : memref<2x1x128xf32, #tpu.memory_space<vmem>>, vector<1x1x128xf32>
      %78 = vector.shape_cast %77 : vector<1x1x128xf32> to vector<1x128xf32>
      %79 = arith.index_cast %arg14 : i32 to index
      %c0_39 = arith.constant 0 : index
      %c0_40 = arith.constant 0 : index
      %80 = vector.load %arg10[%79, %c0_39, %c0_40] : memref<2x1x128xf32, #tpu.memory_space<vmem>>, vector<1x1x128xf32>
      %81 = vector.shape_cast %80 : vector<1x1x128xf32> to vector<1x128xf32>
      %cst_41 = arith.constant dense<0.000000e+00> : vector<128xf32>
      %82 = vector.multi_reduction <add>, %75, %cst_41 [0] : vector<24x128xf32> to vector<128xf32>
      %83 = vector.shape_cast %82 : vector<128xf32> to vector<1x128xf32>
      %cst_42 = arith.constant 2.400000e+01 : f32
      %84 = vector.broadcast %cst_42 : f32 to vector<1x128xf32>
      %85 = arith.divf %83, %84 : vector<1x128xf32>
      %86 = arith.mulf %75, %75 : vector<24x128xf32>
      %cst_43 = arith.constant dense<0.000000e+00> : vector<128xf32>
      %87 = vector.multi_reduction <add>, %86, %cst_43 [0] : vector<24x128xf32> to vector<128xf32>
      %88 = vector.shape_cast %87 : vector<128xf32> to vector<1x128xf32>
      %cst_44 = arith.constant 2.400000e+01 : f32
      %89 = vector.broadcast %cst_44 : f32 to vector<1x128xf32>
      %90 = arith.divf %88, %89 : vector<1x128xf32>
      %91 = arith.mulf %85, %85 : vector<1x128xf32>
      %92 = arith.subf %90, %91 : vector<1x128xf32>
      %93 = vector.broadcast %85 : vector<1x128xf32> to vector<24x128xf32>
      %94 = arith.subf %75, %93 : vector<24x128xf32>
      %cst_45 = arith.constant 9.99999974E-6 : f32
      %95 = vector.broadcast %cst_45 : f32 to vector<1x128xf32>
      %96 = arith.addf %92, %95 : vector<1x128xf32>
      %97 = math.rsqrt %96 : vector<1x128xf32>
      %98 = arith.mulf %78, %97 : vector<1x128xf32>
      %99 = vector.broadcast %98 : vector<1x128xf32> to vector<24x128xf32>
      %100 = arith.mulf %94, %99 : vector<24x128xf32>
      %101 = vector.broadcast %81 : vector<1x128xf32> to vector<24x128xf32>
      %102 = arith.addf %100, %101 : vector<24x128xf32>
      %103 = arith.addf %arg15, %102 : vector<24x128xf32>
      scf.yield %103 : vector<24x128xf32>
    }
    %c2_i32_13 = arith.constant 2 : i32
    %30 = arith.truncf %29 : vector<24x128xf32> to vector<24x128xbf16>
    %c0_14 = arith.constant 0 : index
    %c0_15 = arith.constant 0 : index
    %31 = vector.load %arg11[%c0_14, %c0_15] : memref<128x128xbf16, #tpu.memory_space<vmem>>, vector<128x128xbf16>
    %cst_16 = arith.constant dense<0.000000e+00> : vector<24x128xf32>
    %32 = tpu.matmul %30, %31, %cst_16 {dimension_numbers = #tpu.dot_dimension_numbers<[1], [0], [0], [1], [0, 0, 1, 1], [], []>} : vector<24x128xbf16>, vector<128x128xbf16>, vector<24x128xf32> -> vector<24x128xf32>
    %c0_17 = arith.constant 0 : index
    %c0_18 = arith.constant 0 : index
    %33 = vector.load %arg12[%c0_17, %c0_18] : memref<1x128xf32, #tpu.memory_space<vmem>>, vector<1x128xf32>
    %34 = vector.broadcast %33 : vector<1x128xf32> to vector<24x128xf32>
    %35 = arith.addf %32, %34 : vector<24x128xf32>
    %c0_19 = arith.constant 0 : index
    %c0_20 = arith.constant 0 : index
    %36 = vector.load %arg13[%c0_19, %c0_20] : memref<24x128xf32, #tpu.memory_space<vmem>>, vector<24x128xf32>
    tpu.vector_store %arg13[%c0_19, %c0_20], %35 {strides = array<i32>} : memref<24x128xf32, #tpu.memory_space<vmem>>, vector<24x128xf32>,
    return
  }
  func.func @transform_0(%arg0: i32) -> (i32, i32) {
    %c0_i32 = arith.constant 0 : i32
    %c0_i32_0 = arith.constant 0 : i32
    %c0_i32_1 = arith.constant 0 : i32
    return %c0_i32, %c0_i32_0 : i32, i32
  }
  func.func @transform_1(%arg0: i32) -> (i32, i32) {
    %c0_i32 = arith.constant 0 : i32
    %c0_i32_0 = arith.constant 0 : i32
    %c0_i32_1 = arith.constant 0 : i32
    return %c0_i32, %c0_i32_0 : i32, i32
  }
  func.func @transform_2(%arg0: i32) -> (i32, i32) {
    %c0_i32 = arith.constant 0 : i32
    %c0_i32_0 = arith.constant 0 : i32
    %c0_i32_1 = arith.constant 0 : i32
    return %c0_i32, %c0_i32_0 : i32, i32
  }
  func.func @transform_3(%arg0: i32) -> (i32, i32) {
    %c0_i32 = arith.constant 0 : i32
    %c0_i32_0 = arith.constant 0 : i32
    %c0_i32_1 = arith.constant 0 : i32
    return %c0_i32, %c0_i32_0 : i32, i32
  }
  func.func @transform_4(%arg0: i32) -> (i32, i32, i32) {
    %c0_i32 = arith.constant 0 : i32
    %c0_i32_0 = arith.constant 0 : i32
    %c0_i32_1 = arith.constant 0 : i32
    %c0_i32_2 = arith.constant 0 : i32
    return %c0_i32, %c0_i32_0, %c0_i32_1 : i32, i32, i32
  }
  func.func @transform_5(%arg0: i32) -> (i32, i32, i32) {
    %c0_i32 = arith.constant 0 : i32
    %c0_i32_0 = arith.constant 0 : i32
    %c0_i32_1 = arith.constant 0 : i32
    %c0_i32_2 = arith.constant 0 : i32
    return %c0_i32, %c0_i32_0, %c0_i32_1 : i32, i32, i32
  }
  func.func @transform_6(%arg0: i32) -> (i32, i32, i32) {
    %c0_i32 = arith.constant 0 : i32
    %c0_i32_0 = arith.constant 0 : i32
    %c0_i32_1 = arith.constant 0 : i32
    %c0_i32_2 = arith.constant 0 : i32
    return %c0_i32, %c0_i32_0, %c0_i32_1 : i32, i32, i32
  }
  func.func @transform_7(%arg0: i32) -> (i32, i32, i32) {
    %c0_i32 = arith.constant 0 : i32
    %c0_i32_0 = arith.constant 0 : i32
    %c0_i32_1 = arith.constant 0 : i32
    %c0_i32_2 = arith.constant 0 : i32
    return %c0_i32, %c0_i32_0, %c0_i32_1 : i32, i32, i32
  }
  func.func @transform_8(%arg0: i32) -> (i32, i32, i32) {
    %c0_i32 = arith.constant 0 : i32
    %c0_i32_0 = arith.constant 0 : i32
    %c0_i32_1 = arith.constant 0 : i32
    %c0_i32_2 = arith.constant 0 : i32
    return %c0_i32, %c0_i32_0, %c0_i32_1 : i32, i32, i32
  }
  func.func @transform_9(%arg0: i32) -> (i32, i32, i32) {
    %c0_i32 = arith.constant 0 : i32
    %c0_i32_0 = arith.constant 0 : i32
    %c0_i32_1 = arith.constant 0 : i32
    %c0_i32_2 = arith.constant 0 : i32
    return %c0_i32, %c0_i32_0, %c0_i32_1 : i32, i32, i32
  }
  func.func @transform_10(%arg0: i32) -> (i32, i32) {
    %c0_i32 = arith.constant 0 : i32
    %c0_i32_0 = arith.constant 0 : i32
    %c0_i32_1 = arith.constant 0 : i32
    return %c0_i32, %c0_i32_0 : i32, i32
  }
  func.func @transform_11(%arg0: i32) -> (i32, i32) {
    %c0_i32 = arith.constant 0 : i32
    %c0_i32_0 = arith.constant 0 : i32
    %c0_i32_1 = arith.constant 0 : i32
    return %c0_i32, %c0_i32_0 : i32, i32
  }
  func.func @transform_12(%arg0: i32) -> (i32, i32) {
    %c0_i32 = arith.constant 0 : i32
    %c0_i32_0 = arith.constant 0 : i32
    %c0_i32_1 = arith.constant 0 : i32
    return %c0_i32, %c0_i32_0 : i32, i32
  }
}

</mosaic_0001>

<llo_original>
// kernel: tpu_custom_call.1
$region0: #{tpu_custom_call.1}
  #allocation0 [shape = 'u32[]', space=smem, size = 0x4, offset = 0x4, fixed_abs, tag = 'smem constant byte address 0x4 - core index']
  #allocation1 [shape = 'u32[72,128]{1,0:T(1,128)}', space=vmem, size = 0x9000, scoped, tag = 'internal scratch']
  %s0 = inlined_call_operand.hbm [shape: bf16[24,128], index: 0, kind: input, shape index: {}]
  %s1 = inlined_call_operand.hbm [shape: bf16[128,128], index: 1, kind: input, shape index: {}]
  %s2 = inlined_call_operand.hbm [shape: f32[1,128], index: 2, kind: input, shape index: {}]
  %s3 = inlined_call_operand.hbm [shape: f32[1,128], index: 3, kind: input, shape index: {}]
  %s4 = inlined_call_operand.hbm [shape: bf16[2,128,128], index: 4, kind: input, shape index: {}]
  %s5 = inlined_call_operand.vmem [shape: f32[2,1,128], index: 5, kind: input, shape index: {}]
  %s6 = inlined_call_operand.vmem [shape: f32[2,1,128], index: 6, kind: input, shape index: {}]
  %s7 = inlined_call_operand.hbm [shape: bf16[2,128,128], index: 7, kind: input, shape index: {}]
  %s8 = inlined_call_operand.vmem [shape: f32[2,1,128], index: 8, kind: input, shape index: {}]
  %s9 = inlined_call_operand.vmem [shape: f32[2,1,128], index: 9, kind: input, shape index: {}]
  %s10 = inlined_call_operand.hbm [shape: bf16[128,128], index: 10, kind: input, shape index: {}]
  %s11 = inlined_call_operand.vmem [shape: f32[1,128], index: 11, kind: input, shape index: {}]
  %s12 = inlined_call_operand.hbm [shape: f32[24,128], index: 12, kind: output, shape index: {}]
  %s13 = sld [smem:[#allocation0]]
  $region93: #{tpu_custom_call.1} parent=0
    _
  %s15 = ssub.s32 1, %s13
  %s16 = scalar_select 0, %s15, %s13
  $region1: #{tpu_custom_call.1} parent=0
    #allocation2 [shape = 'u8[6144]{0}', space=vmem, size = 0x1800, scoped, tag = 'input window, operand 0, single buffered']
    #allocation3 [shape = 's32[1]{0}', space=sflag, size = 0x4, scoped, tag = 'scoped memory for tpu_custom_call.1']
    #allocation4 [shape = 's32[1]{0}', space=sflag, size = 0x4, scoped, tag = 'scoped memory for tpu_custom_call.1']
    #allocation5 [shape = 'u8[32768]{0}', space=vmem, size = 0x8000, scoped, tag = 'input window, operand 1, single buffered']
    #allocation6 [shape = 's32[1]{0}', space=sflag, size = 0x4, scoped, tag = 'scoped memory for tpu_custom_call.1']
    #allocation7 [shape = 'u8[512]{0}', space=vmem, size = 0x400, scoped, tag = 'input window, operand 2, single buffered']
    #allocation8 [shape = 'u8[512]{0}', space=vmem, size = 0x400, scoped, tag = 'input window, operand 3, single buffered']
    #allocation9 [shape = 's32[1]{0}', space=sflag, size = 0x4, scoped, tag = 'scoped memory for tpu_custom_call.1']
    #allocation10 [shape = 'u8[65536]{0}', space=vmem, size = 0x10000, scoped, tag = 'input window, operand 4, single buffered']
    #allocation11 [shape = 'u8[65536]{0}', space=vmem, size = 0x10000, scoped, tag = 'input window, operand 7, single buffered']
    #allocation12 [shape = 's32[1]{0}', space=sflag, size = 0x4, scoped, tag = 'scoped memory for tpu_custom_call.1']
    #allocation13 [shape = 'u8[32768]{0}', space=vmem, size = 0x8000, scoped, tag = 'input window, operand 10, single buffered']
    #allocation14 [shape = 'u8[12288]{0}', space=vmem, size = 0x3000, scoped, tag = 'output window, operand 0, single buffered']
    %17 = vsyncpa [#allocation3], 0
    %18 = vsyncpa [#allocation6], 0
    %19 = vsyncpa [#allocation9], 0
    %20 = vsyncpa [#allocation12], 0
    %21 = vsyncpa [#allocation4], 0
    // Predicated region
    $region2: #{tpu_custom_call.1} parent=1 // pred_check
      _
    $region3: #{tpu_custom_call.1} parent=1 // pred_check_branch
      %23 = sbr.rel (0) target = $region5
    $region4: #{tpu_custom_call.1} parent=1 // pred_region
      %25 = vsyncadd [#allocation3], 0
      %s26 = sshll.u32 %s0, 4
      %s27 = int_to_ptr.hbm [resolvable:$true] %s26
      %s28 = sshll.u32 [#allocation2], 4
      %s29 = int_to_ptr.vmem [resolvable:$true] %s28
      %34 = dma.hbm_to_vmem [thread:$0]  %s27, 192, %s29, [#allocation3], 64, 64, 4
    $region5: #{tpu_custom_call.1} parent=1 // pred_fallthru
      _
    // Predicated region
    $region6: #{tpu_custom_call.1} parent=1 // pred_check
      _
    $region7: #{tpu_custom_call.1} parent=1 // pred_check_branch
      %36 = sbr.rel (0) target = $region9
    $region8: #{tpu_custom_call.1} parent=1 // pred_region
      %38 = vsyncadd [#allocation6], 0
      %s39 = sshll.u32 %s1, 4
      %s40 = int_to_ptr.hbm [resolvable:$true] %s39
      %s41 = sshll.u32 [#allocation5], 4
      %s42 = int_to_ptr.vmem [resolvable:$true] %s41
      %47 = dma.hbm_to_vmem [thread:$0]  %s40, 1024, %s42, [#allocation6], 64, 64, 4
    $region9: #{tpu_custom_call.1} parent=1 // pred_fallthru
      _
    // Predicated region
    $region10: #{tpu_custom_call.1} parent=1 // pred_check
      _
    $region11: #{tpu_custom_call.1} parent=1 // pred_check_branch
      %49 = sbr.rel (0) target = $region13
    $region12: #{tpu_custom_call.1} parent=1 // pred_region
      %51 = vsyncadd [#allocation6], 0
      %s53 = sshll.u32 %s2, 4
      %s54 = int_to_ptr.hbm [resolvable:$true] %s53
      %s55 = sshll.u32 [#allocation7], 4
      %s56 = int_to_ptr.vmem [resolvable:$true] %s55
      %58 = dma.hbm_to_vmem [thread:$0]  %s54, 16, %s56, [#allocation6]
    $region13: #{tpu_custom_call.1} parent=1 // pred_fallthru
      _
    // Predicated region
    $region14: #{tpu_custom_call.1} parent=1 // pred_check
      _
    $region15: #{tpu_custom_call.1} parent=1 // pred_check_branch
      %60 = sbr.rel (0) target = $region17
    $region16: #{tpu_custom_call.1} parent=1 // pred_region
      %62 = vsyncadd [#allocation9], 0
      %s64 = sshll.u32 %s3, 4
      %s65 = int_to_ptr.hbm [resolvable:$true] %s64
      %s66 = sshll.u32 [#allocation8], 4
      %s67 = int_to_ptr.vmem [resolvable:$true] %s66
      %69 = dma.hbm_to_vmem [thread:$0]  %s65, 16, %s67, [#allocation9]
    $region17: #{tpu_custom_call.1} parent=1 // pred_fallthru
      _
    // Predicated region
    $region18: #{tpu_custom_call.1} parent=1 // pred_check
      _
    $region19: #{tpu_custom_call.1} parent=1 // pred_check_branch
      %71 = sbr.rel (0) target = $region21
    $region20: #{tpu_custom_call.1} parent=1 // pred_region
      %73 = vsyncadd [#allocation9], 0
      %s74 = sshll.u32 %s4, 4
      %s75 = int_to_ptr.hbm [resolvable:$true] %s74
      %s76 = sshll.u32 [#allocation10], 4
      %s77 = int_to_ptr.vmem [resolvable:$true] %s76
      %82 = dma.hbm_to_vmem [thread:$0]  %s75, 2048, %s77, [#allocation9], 64, 64, 4
    $region21: #{tpu_custom_call.1} parent=1 // pred_fallthru
      _
    // Predicated region
    $region22: #{tpu_custom_call.1} parent=1 // pred_check
      _
    $region23: #{tpu_custom_call.1} parent=1 // pred_check_branch
      %84 = sbr.rel (0) target = $region25
    $region24: #{tpu_custom_call.1} parent=1 // pred_region
      _
    $region25: #{tpu_custom_call.1} parent=1 // pred_fallthru
      _
    // Predicated region
    $region26: #{tpu_custom_call.1} parent=1 // pred_check
      _
    $region27: #{tpu_custom_call.1} parent=1 // pred_check_branch
      %86 = sbr.rel (0) target = $region29
    $region28: #{tpu_custom_call.1} parent=1 // pred_region
      _
    $region29: #{tpu_custom_call.1} parent=1 // pred_fallthru
      _
    // Predicated region
    $region30: #{tpu_custom_call.1} parent=1 // pred_check
      _
    $region31: #{tpu_custom_call.1} parent=1 // pred_check_branch
      %88 = sbr.rel (0) target = $region33
    $region32: #{tpu_custom_call.1} parent=1 // pred_region
      %90 = vsyncadd [#allocation12], 0
      %s91 = sshll.u32 %s7, 4
      %s92 = int_to_ptr.hbm [resolvable:$true] %s91
      %s93 = sshll.u32 [#allocation11], 4
      %s94 = int_to_ptr.vmem [resolvable:$true] %s93
      %99 = dma.hbm_to_vmem [thread:$0]  %s92, 2048, %s94, [#allocation12], 64, 64, 4
    $region33: #{tpu_custom_call.1} parent=1 // pred_fallthru
      _
    // Predicated region
    $region34: #{tpu_custom_call.1} parent=1 // pred_check
      _
    $region35: #{tpu_custom_call.1} parent=1 // pred_check_branch
      %101 = sbr.rel (0) target = $region37
    $region36: #{tpu_custom_call.1} parent=1 // pred_region
      _
    $region37: #{tpu_custom_call.1} parent=1 // pred_fallthru
      _
    // Predicated region
    $region38: #{tpu_custom_call.1} parent=1 // pred_check
      _
    $region39: #{tpu_custom_call.1} parent=1 // pred_check_branch
      %103 = sbr.rel (0) target = $region41
    $region40: #{tpu_custom_call.1} parent=1 // pred_region
      _
    $region41: #{tpu_custom_call.1} parent=1 // pred_fallthru
      _
    // Predicated region
    $region42: #{tpu_custom_call.1} parent=1 // pred_check
      _
    $region43: #{tpu_custom_call.1} parent=1 // pred_check_branch
      %105 = sbr.rel (0) target = $region45
    $region44: #{tpu_custom_call.1} parent=1 // pred_region
      %107 = vsyncadd [#allocation12], 0
      %s108 = sshll.u32 %s10, 4
      %s109 = int_to_ptr.hbm [resolvable:$true] %s108
      %s110 = sshll.u32 [#allocation13], 4
      %s111 = int_to_ptr.vmem [resolvable:$true] %s110
      %116 = dma.hbm_to_vmem [thread:$0]  %s109, 1024, %s111, [#allocation12], 64, 64, 4
    $region45: #{tpu_custom_call.1} parent=1 // pred_fallthru
      _
    // Predicated region
    $region46: #{tpu_custom_call.1} parent=1 // pred_check
      _
    $region47: #{tpu_custom_call.1} parent=1 // pred_check_branch
      %118 = sbr.rel (0) target = $region49
    $region48: #{tpu_custom_call.1} parent=1 // pred_region
      _
    $region49: #{tpu_custom_call.1} parent=1 // pred_fallthru
      _
    // Predicated region
    $region50: #{tpu_custom_call.1} parent=1 // pred_check
      _
    $region51: #{tpu_custom_call.1} parent=1 // pred_check_branch
      %120 = sbr.rel (0) target = $region53
    $region52: #{tpu_custom_call.1} parent=1 // pred_region
      %122 = dma.done [#allocation3], 192
    $region53: #{tpu_custom_call.1} parent=1 // pred_fallthru
      _
    // Predicated region
    $region54: #{tpu_custom_call.1} parent=1 // pred_check
      _
    $region55: #{tpu_custom_call.1} parent=1 // pred_check_branch
      %124 = sbr.rel (0) target = $region57
    $region56: #{tpu_custom_call.1} parent=1 // pred_region
      %126 = dma.done [#allocation6], 1024
    $region57: #{tpu_custom_call.1} parent=1 // pred_fallthru
      _
    // Predicated region
    $region58: #{tpu_custom_call.1} parent=1 // pred_check
      _
    $region59: #{tpu_custom_call.1} parent=1 // pred_check_branch
      %128 = sbr.rel (0) target = $region61
    $region60: #{tpu_custom_call.1} parent=1 // pred_region
      %130 = dma.done [#allocation6], 16
    $region61: #{tpu_custom_call.1} parent=1 // pred_fallthru
      _
    // Predicated region
    $region62: #{tpu_custom_call.1} parent=1 // pred_check
      _
    $region63: #{tpu_custom_call.1} parent=1 // pred_check_branch
      %132 = sbr.rel (0) target = $region65
    $region64: #{tpu_custom_call.1} parent=1 // pred_region
      %134 = dma.done [#allocation9], 16
    $region65: #{tpu_custom_call.1} parent=1 // pred_fallthru
      _
    // Predicated region
    $region66: #{tpu_custom_call.1} parent=1 // pred_check
      _
    $region67: #{tpu_custom_call.1} parent=1 // pred_check_branch
      %136 = sbr.rel (0) target = $region69
    $region68: #{tpu_custom_call.1} parent=1 // pred_region
      %138 = dma.done [#allocation9], 2048
    $region69: #{tpu_custom_call.1} parent=1 // pred_fallthru
      _
    // Predicated region
    $region70: #{tpu_custom_call.1} parent=1 // pred_check
      _
    $region71: #{tpu_custom_call.1} parent=1 // pred_check_branch
      %140 = sbr.rel (0) target = $region73
    $region72: #{tpu_custom_call.1} parent=1 // pred_region
      %142 = dma.done [#allocation12], 2048
    $region73: #{tpu_custom_call.1} parent=1 // pred_fallthru
      _
    // Predicated region
    $region74: #{tpu_custom_call.1} parent=1 // pred_check
      _
    $region75: #{tpu_custom_call.1} parent=1 // pred_check_branch
      %144 = sbr.rel (0) target = $region77
    $region76: #{tpu_custom_call.1} parent=1 // pred_region
      %146 = dma.done [#allocation12], 1024
    $region77: #{tpu_custom_call.1} parent=1 // pred_fallthru
      _
    %v147 = vld [vmem:[#allocation2] sm:$0xf]
    %v148 = vld [vmem:[#allocation2 + $0x4] sm:$0xf]
    %v149 = vld [vmem:[#allocation2 + $0x8] sm:$0xf]
    %v150 = vld [vmem:[#allocation5] sm:$0xf]
    %v151 = vld [vmem:[#allocation5 + $0x4] sm:$0xf]
    %v152 = vld [vmem:[#allocation5 + $0x8] sm:$0xf]
    %v153 = vld [vmem:[#allocation5 + $0xc] sm:$0xf]
    %v154 = vld [vmem:[#allocation5 + $0x10] sm:$0xf]
    %v155 = vld [vmem:[#allocation5 + $0x14] sm:$0xf]
    %v156 = vld [vmem:[#allocation5 + $0x18] sm:$0xf]
    %v157 = vld [vmem:[#allocation5 + $0x1c] sm:$0xf]
    %v158 = vld [vmem:[#allocation5 + $0x20] sm:$0xf]
    %v159 = vld [vmem:[#allocation5 + $0x24] sm:$0xf]
    %v160 = vld [vmem:[#allocation5 + $0x28] sm:$0xf]
    %v161 = vld [vmem:[#allocation5 + $0x2c] sm:$0xf]
    %v162 = vld [vmem:[#allocation5 + $0x30] sm:$0xf]
    %v163 = vld [vmem:[#allocation5 + $0x34] sm:$0xf]
    %v164 = vld [vmem:[#allocation5 + $0x38] sm:$0xf]
    %v165 = vld [vmem:[#allocation5 + $0x3c] sm:$0xf]
    %v169 = vunpack.c.l.b16 %v147
    %v170 = vunpack.c.l.b16 %v148
    %v171 = vunpack.c.l.b16 %v149
    %v172 = vpack.c.b16 %v170, %v169
    %v173 = vpack.c.b16 %v171, %v171
    %v192 = vunpack.c.l.b16 %v150
    %v193 = vunpack.c.l.b16 %v151
    %v194 = vunpack.c.l.b16 %v152
    %v195 = vunpack.c.l.b16 %v153
    %v196 = vunpack.c.l.b16 %v154
    %v197 = vunpack.c.l.b16 %v155
    %v198 = vunpack.c.l.b16 %v156
    %v199 = vunpack.c.l.b16 %v157
    %v200 = vunpack.c.l.b16 %v158
    %v201 = vunpack.c.l.b16 %v159
    %v202 = vunpack.c.l.b16 %v160
    %v203 = vunpack.c.l.b16 %v161
    %v204 = vunpack.c.l.b16 %v162
    %v205 = vunpack.c.l.b16 %v163
    %v206 = vunpack.c.l.b16 %v164
    %v207 = vunpack.c.l.b16 %v165
    %v208 = vpack.c.b16 %v193, %v192
    %v209 = vpack.c.b16 %v195, %v194
    %v210 = vpack.c.b16 %v197, %v196
    %v211 = vpack.c.b16 %v199, %v198
    %v212 = vpack.c.b16 %v201, %v200
    %v213 = vpack.c.b16 %v203, %v202
    %v214 = vpack.c.b16 %v205, %v204
    %v215 = vpack.c.b16 %v207, %v206
    %224 = vmatpush.bf16.msra.mxu0 %v215
    %225 = vmatpush.bf16.msra.mxu0 %v214
    %226 = vmatpush.bf16.msra.mxu0 %v213
    %227 = vmatpush.bf16.msra.mxu0 %v212
    %228 = vmatpush.bf16.msra.mxu0 %v211
    %229 = vmatpush.bf16.msra.mxu0 %v210
    %230 = vmatpush.bf16.msra.mxu0 %v209
    %231 = vmatpush.bf16.msra.mxu0 %v208
    %232 = vmatmul.bf16.gmra.mxu0 %v172
    %v233 = vpop.f32.mrf.mxu0
    %v234 = vadd.f32 0.0, %v233
    %v235 = vpop.f32.mrf.mxu0
    %v236 = vadd.f32 0.0, %v235
    %237 = vmatmul.bf16.gmra.mxu0 %v173
    %v238 = vpop.f32.mrf.mxu0
    %v239 = vadd.f32 0.0, %v238
    %v240 = vpop.f32.mrf.mxu0
    %241 = vdwg.mxu0
    %v242 = vld [vmem:[#allocation7] sm:$0x1]
    %v243 = vld [vmem:[#allocation8] sm:$0x1]
    %v244 = vadd.f32 %v234, %v236
    %v245 = vadd.f32 %v244, %v239
    %v246 = vrot.slane %v245, 4
    %v247 = vadd.f32 %v245, %v246
    %v248 = vrot.slane %v247, 2
    %v249 = vadd.f32 %v247, %v248
    %v250 = vrot.slane %v249, 1
    %v251 = vadd.f32 %v249, %v250
    %v252 = vrcp.pop 24.0
    %v253 = vmul.f32 24.0, %v252
    %v254 = vsub.f32 1.0, %v253
    %v255 = vmul.f32 %v252, %v254
    %v256 = vadd.f32 %v252, %v255
    %vm257 = vweird.f32 %v252
    %v258 = vsel %vm257, %v252, %v256
    %v259 = vmul.f32 %v251, %v258
    %v260 = vmul.f32 %v234, %v234
    %v261 = vmul.f32 %v236, %v236
    %v262 = vmul.f32 %v239, %v239
    %v263 = vadd.f32 %v260, %v261
    %v264 = vadd.f32 %v263, %v262
    %v265 = vrot.slane %v264, 4
    %v266 = vadd.f32 %v264, %v265
    %v267 = vrot.slane %v266, 2
    %v268 = vadd.f32 %v266, %v267
    %v269 = vrot.slane %v268, 1
    %v270 = vadd.f32 %v268, %v269
    %v271 = vmul.f32 %v270, %v258
    %v272 = vmul.f32 %v259, %v259
    %v273 = vsub.f32 %v271, %v272
    %v274 = vsub.f32 %v234, %v259
    %v275 = vsub.f32 %v236, %v259
    %v276 = vsub.f32 %v239, %v259
    %v277 = vadd.f32 %v273, 1e-05
    %v278 = vrsqrt.pop %v277
    %v279 = vmul.f32 %v278, %v277
    %v280 = vmul.f32 %v279, %v278
    %v281 = vmul.f32 0.5, %v280
    %v282 = vsub.f32 1.5, %v281
    %v283 = vmul.f32 %v278, %v282
    %vm284 = vweird.f32 %v277
    %vm285 = vweird.f32 %v278
    %vm286 = vmor %vm284, %vm285
    %v287 = vsel %vm286, %v278, %v283
    %v288 = vmul.f32 %v242, %v287
    %v290 = vperm.slane %v288, 0
    %v292 = vmul.f32 %v274, %v290
    %v293 = vmul.f32 %v275, %v290
    %v294 = vmul.f32 %v276, %v290
    %v296 = vperm.slane %v243, 0
    %v298 = vadd.f32 %v292, %v296
    %v299 = vadd.f32 %v293, %v296
    %v300 = vadd.f32 %v294, %v296
    %v301 = vmax.f32 %v298, 0.0
    %v302 = vmax.f32 %v299, 0.0
    %v303 = vmax.f32 %v300, 0.0
    loop: start=0, step=1, limit=2
    $region78: #{tpu_custom_call.1} parent=1 // loop_pre_header
      _
    $region79: #{tpu_custom_call.1} parent=1 // loop_header
      %s305 = sphi 0, %s309
      %p306 = scmp.ge.s32.totalorder %s305, 2
      %v310 = vphi %v301, %v597
      %v311 = vphi %v302, %v598
      %v312 = vphi %v303, %v599
    $region80: #{tpu_custom_call.1} parent=1 // loop_header_branch
      %308 = sbr.rel (%p306) target = $region84
    $region81: #{tpu_custom_call.1} parent=1 // loop_body
      %v313 = vpack.c.bf16 %v311, %v310
      %v314 = vpack.c.bf16 %v312, %v312
      %s315 = smul.u32 %s305, 16
      %s316 = smul.addr %s315, 4
      %s317 = scalar_lea.vmem [#allocation10], %s316
      %v318 = vld [vmem:[%s317] sm:$0xf]
      %v319 = vld [vmem:[%s317 + $0x4] sm:$0xf]
      %v320 = vld [vmem:[%s317 + $0x8] sm:$0xf]
      %v321 = vld [vmem:[%s317 + $0xc] sm:$0xf]
      %v322 = vld [vmem:[%s317 + $0x10] sm:$0xf]
      %v323 = vld [vmem:[%s317 + $0x14] sm:$0xf]
      %v324 = vld [vmem:[%s317 + $0x18] sm:$0xf]
      %v325 = vld [vmem:[%s317 + $0x1c] sm:$0xf]
      %v326 = vld [vmem:[%s317 + $0x20] sm:$0xf]
      %v327 = vld [vmem:[%s317 + $0x24] sm:$0xf]
      %v328 = vld [vmem:[%s317 + $0x28] sm:$0xf]
      %v329 = vld [vmem:[%s317 + $0x2c] sm:$0xf]
      %v330 = vld [vmem:[%s317 + $0x30] sm:$0xf]
      %v331 = vld [vmem:[%s317 + $0x34] sm:$0xf]
      %v332 = vld [vmem:[%s317 + $0x38] sm:$0xf]
      %v333 = vld [vmem:[%s317 + $0x3c] sm:$0xf]
      %v350 = vunpack.c.l.b16 %v318
      %v351 = vunpack.c.l.b16 %v319
      %v352 = vunpack.c.l.b16 %v320
      %v353 = vunpack.c.l.b16 %v321
      %v354 = vunpack.c.l.b16 %v322
      %v355 = vunpack.c.l.b16 %v323
      %v356 = vunpack.c.l.b16 %v324
      %v357 = vunpack.c.l.b16 %v325
      %v358 = vunpack.c.l.b16 %v326
      %v359 = vunpack.c.l.b16 %v327
      %v360 = vunpack.c.l.b16 %v328
      %v361 = vunpack.c.l.b16 %v329
      %v362 = vunpack.c.l.b16 %v330
      %v363 = vunpack.c.l.b16 %v331
      %v364 = vunpack.c.l.b16 %v332
      %v365 = vunpack.c.l.b16 %v333
      %v366 = vpack.c.b16 %v351, %v350
      %v367 = vpack.c.b16 %v353, %v352
      %v368 = vpack.c.b16 %v355, %v354
      %v369 = vpack.c.b16 %v357, %v356
      %v370 = vpack.c.b16 %v359, %v358
      %v371 = vpack.c.b16 %v361, %v360
      %v372 = vpack.c.b16 %v363, %v362
      %v373 = vpack.c.b16 %v365, %v364
      %382 = vmatpush.bf16.msra.mxu0 %v373
      %383 = vmatpush.bf16.msra.mxu0 %v372
      %384 = vmatpush.bf16.msra.mxu0 %v371
      %385 = vmatpush.bf16.msra.mxu0 %v370
      %386 = vmatpush.bf16.msra.mxu0 %v369
      %387 = vmatpush.bf16.msra.mxu0 %v368
      %388 = vmatpush.bf16.msra.mxu0 %v367
      %389 = vmatpush.bf16.msra.mxu0 %v366
      %390 = vmatmul.bf16.gmra.mxu0 %v313
      %v391 = vpop.f32.mrf.mxu0
      %v392 = vadd.f32 0.0, %v391
      %v393 = vpop.f32.mrf.mxu0
      %v394 = vadd.f32 0.0, %v393
      %395 = vmatmul.bf16.gmra.mxu0 %v314
      %v396 = vpop.f32.mrf.mxu0
      %v397 = vadd.f32 0.0, %v396
      %v398 = vpop.f32.mrf.mxu0
      %399 = vdwg.mxu0
      %s400 = scalar_lea.vmem %s5, %s305
      %v401 = vld [vmem:[%s400] sm:$0x1]
      %s402 = scalar_lea.vmem %s6, %s305
      %v403 = vld [vmem:[%s402] sm:$0x1]
      %v404 = vadd.f32 %v392, %v394
      %v405 = vadd.f32 %v404, %v397
      %v406 = vrot.slane %v405, 4
      %v407 = vadd.f32 %v405, %v406
      %v408 = vrot.slane %v407, 2
      %v409 = vadd.f32 %v407, %v408
      %v410 = vrot.slane %v409, 1
      %v411 = vadd.f32 %v409, %v410
      %v412 = vmul.f32 %v411, %v258
      %v413 = vmul.f32 %v392, %v392
      %v414 = vmul.f32 %v394, %v394
      %v415 = vmul.f32 %v397, %v397
      %v416 = vadd.f32 %v413, %v414
      %v417 = vadd.f32 %v416, %v415
      %v418 = vrot.slane %v417, 4
      %v419 = vadd.f32 %v417, %v418
      %v420 = vrot.slane %v419, 2
      %v421 = vadd.f32 %v419, %v420
      %v422 = vrot.slane %v421, 1
      %v423 = vadd.f32 %v421, %v422
      %v424 = vmul.f32 %v423, %v258
      %v425 = vmul.f32 %v412, %v412
      %v426 = vsub.f32 %v424, %v425
      %v427 = vsub.f32 %v392, %v412
      %v428 = vsub.f32 %v394, %v412
      %v429 = vsub.f32 %v397, %v412
      %v430 = vadd.f32 %v426, 1e-05
      %v431 = vrsqrt.pop %v430
      %v432 = vmul.f32 %v431, %v430
      %v433 = vmul.f32 %v432, %v431
      %v434 = vmul.f32 0.5, %v433
      %v435 = vsub.f32 1.5, %v434
      %v436 = vmul.f32 %v431, %v435
      %vm437 = vweird.f32 %v430
      %vm438 = vweird.f32 %v431
      %vm439 = vmor %vm437, %vm438
      %v440 = vsel %vm439, %v431, %v436
      %v441 = vmul.f32 %v401, %v440
      %v443 = vperm.slane %v441, 0
      %v445 = vmul.f32 %v427, %v443
      %v446 = vmul.f32 %v428, %v443
      %v447 = vmul.f32 %v429, %v443
      %v449 = vperm.slane %v403, 0
      %v451 = vadd.f32 %v445, %v449
      %v452 = vadd.f32 %v446, %v449
      %v453 = vadd.f32 %v447, %v449
      %v454 = vmax.f32 %v451, 0.0
      %v455 = vmax.f32 %v452, 0.0
      %v456 = vmax.f32 %v453, 0.0
      %v457 = vpack.c.bf16 %v455, %v454
      %v458 = vpack.c.bf16 %v456, %v456
      %s459 = smul.addr %s315, 4
      %s460 = scalar_lea.vmem [#allocation11], %s459
      %v461 = vld [vmem:[%s460] sm:$0xf]
      %v462 = vld [vmem:[%s460 + $0x4] sm:$0xf]
      %v463 = vld [vmem:[%s460 + $0x8] sm:$0xf]
      %v464 = vld [vmem:[%s460 + $0xc] sm:$0xf]
      %v465 = vld [vmem:[%s460 + $0x10] sm:$0xf]
      %v466 = vld [vmem:[%s460 + $0x14] sm:$0xf]
      %v467 = vld [vmem:[%s460 + $0x18] sm:$0xf]
      %v468 = vld [vmem:[%s460 + $0x1c] sm:$0xf]
      %v469 = vld [vmem:[%s460 + $0x20] sm:$0xf]
      %v470 = vld [vmem:[%s460 + $0x24] sm:$0xf]
      %v471 = vld [vmem:[%s460 + $0x28] sm:$0xf]
      %v472 = vld [vmem:[%s460 + $0x2c] sm:$0xf]
      %v473 = vld [vmem:[%s460 + $0x30] sm:$0xf]
      %v474 = vld [vmem:[%s460 + $0x34] sm:$0xf]
      %v475 = vld [vmem:[%s460 + $0x38] sm:$0xf]
      %v476 = vld [vmem:[%s460 + $0x3c] sm:$0xf]
      %v493 = vunpack.c.l.b16 %v461
      %v494 = vunpack.c.l.b16 %v462
      %v495 = vunpack.c.l.b16 %v463
      %v496 = vunpack.c.l.b16 %v464
      %v497 = vunpack.c.l.b16 %v465
      %v498 = vunpack.c.l.b16 %v466
      %v499 = vunpack.c.l.b16 %v467
      %v500 = vunpack.c.l.b16 %v468
      %v501 = vunpack.c.l.b16 %v469
      %v502 = vunpack.c.l.b16 %v470
      %v503 = vunpack.c.l.b16 %v471
      %v504 = vunpack.c.l.b16 %v472
      %v505 = vunpack.c.l.b16 %v473
      %v506 = vunpack.c.l.b16 %v474
      %v507 = vunpack.c.l.b16 %v475
      %v508 = vunpack.c.l.b16 %v476
      %v509 = vpack.c.b16 %v494, %v493
      %v510 = vpack.c.b16 %v496, %v495
      %v511 = vpack.c.b16 %v498, %v497
      %v512 = vpack.c.b16 %v500, %v499
      %v513 = vpack.c.b16 %v502, %v501
      %v514 = vpack.c.b16 %v504, %v503
      %v515 = vpack.c.b16 %v506, %v505
      %v516 = vpack.c.b16 %v508, %v507
      %525 = vmatpush.bf16.msra.mxu0 %v516
      %526 = vmatpush.bf16.msra.mxu0 %v515
      %527 = vmatpush.bf16.msra.mxu0 %v514
      %528 = vmatpush.bf16.msra.mxu0 %v513
      %529 = vmatpush.bf16.msra.mxu0 %v512
      %530 = vmatpush.bf16.msra.mxu0 %v511
      %531 = vmatpush.bf16.msra.mxu0 %v510
      %532 = vmatpush.bf16.msra.mxu0 %v509
      %533 = vmatmul.bf16.gmra.mxu0 %v457
      %v534 = vpop.f32.mrf.mxu0
      %v535 = vadd.f32 0.0, %v534
      %v536 = vpop.f32.mrf.mxu0
      %v537 = vadd.f32 0.0, %v536
      %538 = vmatmul.bf16.gmra.mxu0 %v458
      %v539 = vpop.f32.mrf.mxu0
      %v540 = vadd.f32 0.0, %v539
      %v541 = vpop.f32.mrf.mxu0
      %542 = vdwg.mxu0
      %s543 = scalar_lea.vmem %s8, %s305
      %v544 = vld [vmem:[%s543] sm:$0x1]
      %s545 = scalar_lea.vmem %s9, %s305
      %v546 = vld [vmem:[%s545] sm:$0x1]
      %v547 = vadd.f32 %v535, %v537
      %v548 = vadd.f32 %v547, %v540
      %v549 = vrot.slane %v548, 4
      %v550 = vadd.f32 %v548, %v549
      %v551 = vrot.slane %v550, 2
      %v552 = vadd.f32 %v550, %v551
      %v553 = vrot.slane %v552, 1
      %v554 = vadd.f32 %v552, %v553
      %v555 = vmul.f32 %v554, %v258
      %v556 = vmul.f32 %v535, %v535
      %v557 = vmul.f32 %v537, %v537
      %v558 = vmul.f32 %v540, %v540
      %v559 = vadd.f32 %v556, %v557
      %v560 = vadd.f32 %v559, %v558
      %v561 = vrot.slane %v560, 4
      %v562 = vadd.f32 %v560, %v561
      %v563 = vrot.slane %v562, 2
      %v564 = vadd.f32 %v562, %v563
      %v565 = vrot.slane %v564, 1
      %v566 = vadd.f32 %v564, %v565
      %v567 = vmul.f32 %v566, %v258
      %v568 = vmul.f32 %v555, %v555
      %v569 = vsub.f32 %v567, %v568
      %v570 = vsub.f32 %v535, %v555
      %v571 = vsub.f32 %v537, %v555
      %v572 = vsub.f32 %v540, %v555
      %v573 = vadd.f32 %v569, 1e-05
      %v574 = vrsqrt.pop %v573
      %v575 = vmul.f32 %v574, %v573
      %v576 = vmul.f32 %v575, %v574
      %v577 = vmul.f32 0.5, %v576
      %v578 = vsub.f32 1.5, %v577
      %v579 = vmul.f32 %v574, %v578
      %vm580 = vweird.f32 %v573
      %vm581 = vweird.f32 %v574
      %vm582 = vmor %vm580, %vm581
      %v583 = vsel %vm582, %v574, %v579
      %v584 = vmul.f32 %v544, %v583
      %v586 = vperm.slane %v584, 0
      %v588 = vmul.f32 %v570, %v586
      %v589 = vmul.f32 %v571, %v586
      %v590 = vmul.f32 %v572, %v586
      %v592 = vperm.slane %v546, 0
      %v594 = vadd.f32 %v588, %v592
      %v595 = vadd.f32 %v589, %v592
      %v596 = vadd.f32 %v590, %v592
      %v597 = vadd.f32 %v310, %v594
      %v598 = vadd.f32 %v311, %v595
      %v599 = vadd.f32 %v312, %v596
    $region82: #{tpu_custom_call.1} parent=1 // loop_footer
      %s309 = sadd.s32 1, %s305
    $region83: #{tpu_custom_call.1} parent=1 // loop_footer_branch
      %304 = sbr.rel target = $region79
    $region84: #{tpu_custom_call.1} parent=1 // loop_exit
      _
    %v600 = vpack.c.bf16 %v311, %v310
    %v601 = vpack.c.bf16 %v312, %v312
    %v602 = vld [vmem:[#allocation13] sm:$0xf]
    %v603 = vld [vmem:[#allocation13 + $0x4] sm:$0xf]
    %v604 = vld [vmem:[#allocation13 + $0x8] sm:$0xf]
    %v605 = vld [vmem:[#allocation13 + $0xc] sm:$0xf]
    %v606 = vld [vmem:[#allocation13 + $0x10] sm:$0xf]
    %v607 = vld [vmem:[#allocation13 + $0x14] sm:$0xf]
    %v608 = vld [vmem:[#allocation13 + $0x18] sm:$0xf]
    %v609 = vld [vmem:[#allocation13 + $0x1c] sm:$0xf]
    %v610 = vld [vmem:[#allocation13 + $0x20] sm:$0xf]
    %v611 = vld [vmem:[#allocation13 + $0x24] sm:$0xf]
    %v612 = vld [vmem:[#allocation13 + $0x28] sm:$0xf]
    %v613 = vld [vmem:[#allocation13 + $0x2c] sm:$0xf]
    %v614 = vld [vmem:[#allocation13 + $0x30] sm:$0xf]
    %v615 = vld [vmem:[#allocation13 + $0x34] sm:$0xf]
    %v616 = vld [vmem:[#allocation13 + $0x38] sm:$0xf]
    %v617 = vld [vmem:[#allocation13 + $0x3c] sm:$0xf]
    %v618 = vld [vmem:[%s11] sm:$0x1]
    %v620 = vperm.slane %v618, 0
    %v638 = vunpack.c.l.b16 %v602
    %v639 = vunpack.c.l.b16 %v603
    %v640 = vunpack.c.l.b16 %v604
    %v641 = vunpack.c.l.b16 %v605
    %v642 = vunpack.c.l.b16 %v606
    %v643 = vunpack.c.l.b16 %v607
    %v644 = vunpack.c.l.b16 %v608
    %v645 = vunpack.c.l.b16 %v609
    %v646 = vunpack.c.l.b16 %v610
    %v647 = vunpack.c.l.b16 %v611
    %v648 = vunpack.c.l.b16 %v612
    %v649 = vunpack.c.l.b16 %v613
    %v650 = vunpack.c.l.b16 %v614
    %v651 = vunpack.c.l.b16 %v615
    %v652 = vunpack.c.l.b16 %v616
    %v653 = vunpack.c.l.b16 %v617
    %v654 = vpack.c.b16 %v639, %v638
    %v655 = vpack.c.b16 %v641, %v640
    %v656 = vpack.c.b16 %v643, %v642
    %v657 = vpack.c.b16 %v645, %v644
    %v658 = vpack.c.b16 %v647, %v646
    %v659 = vpack.c.b16 %v649, %v648
    %v660 = vpack.c.b16 %v651, %v650
    %v661 = vpack.c.b16 %v653, %v652
    %670 = vmatpush.bf16.msra.mxu0 %v661
    %671 = vmatpush.bf16.msra.mxu0 %v660
    %672 = vmatpush.bf16.msra.mxu0 %v659
    %673 = vmatpush.bf16.msra.mxu0 %v658
    %674 = vmatpush.bf16.msra.mxu0 %v657
    %675 = vmatpush.bf16.msra.mxu0 %v656
    %676 = vmatpush.bf16.msra.mxu0 %v655
    %677 = vmatpush.bf16.msra.mxu0 %v654
    %678 = vmatmul.bf16.gmra.mxu0 %v600
    %v679 = vpop.f32.mrf.mxu0
    %v680 = vadd.f32 %v620, %v679
    %v681 = vpop.f32.mrf.mxu0
    %v682 = vadd.f32 %v620, %v681
    %683 = vmatmul.bf16.gmra.mxu0 %v601
    %v684 = vpop.f32.mrf.mxu0
    %v685 = vadd.f32 %v620, %v684
    %v686 = vpop.f32.mrf.mxu0
    %687 = vdwg.mxu0
    %688 = vst [vmem:[#allocation14] sm:$0xff] %v680
    %689 = vst [vmem:[#allocation14 + $0x8] sm:$0xff] %v682
    %690 = vst [vmem:[#allocation14 + $0x10] sm:$0xff] %v685
    // Predicated region
    $region85: #{tpu_custom_call.1} parent=1 // pred_check
      _
    $region86: #{tpu_custom_call.1} parent=1 // pred_check_branch
      %692 = sbr.rel (0) target = $region88
    $region87: #{tpu_custom_call.1} parent=1 // pred_region
      %694 = vsyncadd [#allocation4], 0
      %s695 = sshll.u32 [#allocation14], 4
      %s696 = int_to_ptr.vmem [resolvable:$true] %s695
      %s697 = sshll.u32 %s12, 4
      %s698 = int_to_ptr.hbm [resolvable:$true] %s697
      %703 = dma.vmem_to_hbm [thread:$0]  %s696, 384, %s698, [#allocation4], 128, 128, 8
    $region88: #{tpu_custom_call.1} parent=1 // pred_fallthru
      _
    // Predicated region
    $region89: #{tpu_custom_call.1} parent=1 // pred_check
      _
    $region90: #{tpu_custom_call.1} parent=1 // pred_check_branch
      %705 = sbr.rel (0) target = $region92
    $region91: #{tpu_custom_call.1} parent=1 // pred_region
      %707 = dma.done [#allocation4], 384
    $region92: #{tpu_custom_call.1} parent=1 // pred_fallthru
      _
    %708 = vsyncpa [#allocation3], 1
    %709 = vsyncpa [#allocation6], 1
    %710 = vsyncpa [#allocation9], 1
    %711 = vsyncpa [#allocation12], 1
    %712 = vsyncpa [#allocation4], 1

</llo_original>
